<compile_context>
chip_gen: v5e
topology: v5e:2x2
jax: 0.10.0
libtpu: 0.0.40
codegen_flags: <defaults>
</compile_context>

<pallas_src>
import functools

import jax
import jax.numpy as jnp
import numpy as np
from jax import lax
from jax.experimental import pallas as pl
from jax.experimental.pallas import tpu as pltpu


# ---------------------------------------------------------------------------
# Fused ChannelGate-scale + ChannelPool Pallas kernel.
#   xg   = x * gate            (gate broadcast over the spatial lanes)
#   pool = [max_C(xg), mean_C(xg)]
# ---------------------------------------------------------------------------
def _gated_channel_pool_kernel(g_ref, x_ref, xg_ref, pool_ref, *, inv_c):
    # g_ref:   (nb, C, 1)     channel-gate vector
    # x_ref:   (nb, C, thw)   lane-dense input tile
    # xg_ref:  (nb, C, thw)   gated activations (output)
    # pool_ref:(nb, 2, thw)   [max over C, mean over C] of the gated tile
    x = x_ref[...]
    g = g_ref[...].astype(x.dtype)
    xg = x * g                                        # lane-broadcast multiply
    xg_ref[...] = xg

    x_max = jnp.max(xg, axis=1, keepdims=True)                              # input dtype (exact)
    x_avg = jnp.sum(xg.astype(jnp.float32), axis=1, keepdims=True) * inv_c  # f32 accumulate
    # Two sub-sublane stores; the pooled output is ~2/C of the kernel's HBM
    # traffic (the gated-x write dominates), so this is negligible.
    pool_ref[:, 0:1, :] = x_max.astype(pool_ref.dtype)
    pool_ref[:, 1:2, :] = x_avg.astype(pool_ref.dtype)


def _default_block_bytes():
    """Per-generation input-block budget.

    The kernel double-buffers both the x input block and a same-size gated-x
    output block, so budget ~VMEM/16 per block, capped at 4 MiB (safe on v5e's
    16 MiB scoped default once vmem_limit_bytes is raised, comfortable on
    v6e's 128 MiB and v7x's 64 MiB)."""
    try:
        info = pltpu.get_tpu_info()
        vmem = int(getattr(info, "vmem_capacity_bytes", 64 << 20))
    except Exception:
        vmem = 64 << 20
    return int(min(4 << 20, max(1 << 20, vmem // 16)))


def fused_channel_gate_pool(x, gate, *, target_block_bytes=None):
    """x: (N, C, H, W), gate: (N, C).  Returns (x_gated, pooled):
         x_gated = x * gate[:, :, None, None]                 (N, C, H, W)
         pooled  = [max_C(x_gated), mean_C(x_gated)]          (N, 2, H, W)
    """
    N, C, H, W = x.shape
    HW = H * W
    itemsize = jnp.dtype(x.dtype).itemsize
    if target_block_bytes is None:
        target_block_bytes = _default_block_bytes()

    # --- spatial tiling: pick the tile first, then pad H*W up to the tile ---
    hw_units = pl.cdiv(HW, 128)                                   # 128-lane units
    block_units = max(1, min(hw_units,
                             target_block_bytes // max(1, C * 128 * itemsize)))
    thw = block_units * 128
    num_spatial_blocks = pl.cdiv(hw_units, block_units)
    hw_pad = num_spatial_blocks * thw                             # pad-to-tile

    # --- batch blocking for small feature maps (amortize per-step overhead) --
    nb = 1
    if num_spatial_blocks == 1 and N > 1:
        budget_nb = max(1, target_block_bytes // max(1, C * thw * itemsize))
        budget_nb = min(budget_nb, max(1, N // 2))   # keep >=2 grid steps (2 TCs on v7x)
        nb = max(d for d in range(1, min(N, budget_nb) + 1) if N % d == 0)
    grid_n = N // nb

    xf = x.reshape(N, C, HW)
    if hw_pad != HW:
        # Padding value is irrelevant: padded spatial columns are sliced off.
        xf = jnp.pad(xf, ((0, 0), (0, 0), (0, hw_pad - HW)))
    g3 = gate.astype(x.dtype).reshape(N, C, 1)

    # VMEM budget: double-buffered x block + same-size gated-x block + small
    # pooled / gate blocks, plus headroom for compiler scratch.
    in_block = nb * C * thw * itemsize
    pool_block = nb * 2 * thw * itemsize
    gate_block = nb * C * itemsize
    vmem_need = 2 * (2 * in_block + pool_block + gate_block) + (2 << 20)
    vmem_limit = int(min(48 << 20, max(vmem_need, 16 << 20)))

    xg, pooled = pl.pallas_call(
        functools.partial(_gated_channel_pool_kernel, inv_c=1.0 / C),
        out_shape=(jax.ShapeDtypeStruct((N, C, hw_pad), x.dtype),
                   jax.ShapeDtypeStruct((N, 2, hw_pad), x.dtype)),
        grid_spec=pltpu.PrefetchScalarGridSpec(
            num_scalar_prefetch=0,
            grid=(grid_n, num_spatial_blocks),
            in_specs=[pl.BlockSpec((nb, C, 1), lambda n, s: (n, 0, 0)),
                      pl.BlockSpec((nb, C, thw), lambda n, s: (n, 0, s))],
            out_specs=[pl.BlockSpec((nb, C, thw), lambda n, s: (n, 0, s)),
                       pl.BlockSpec((nb, 2, thw), lambda n, s: (n, 0, s))],
        ),
        compiler_params=pltpu.CompilerParams(
            dimension_semantics=("parallel", "parallel"),
            vmem_limit_bytes=vmem_limit,
        ),
        cost_estimate=pl.CostEstimate(
            flops=3 * N * C * hw_pad,          # gate mul + max cmp + sum add
            transcendentals=0,
            bytes_accessed=(2 * N * C * hw_pad + 2 * N * hw_pad + N * C) * itemsize,
        ),
    )(g3, xf)
    # TODO(synk): for very large C, add a C grid axis ("arbitrary") with running
    # max/sum accumulators in VMEM scratch, finalized via pl.when on the last step.

    xg = xg[:, :, :HW].reshape(N, C, H, W)
    pooled = pooled[:, :, :HW].reshape(N, 2, H, W)
    return xg, pooled


# ---------------------------------------------------------------------------
# Rest of CBAM in plain JAX (spectral_norm init, tiny gate MLP, 7x7 conv, BN,
# sigmoid).  These all operate on tensors C-times smaller than x (or tiny
# matrices), so they are HBM-noise; only the big-NCHW passes are Pallas-fused.
# ---------------------------------------------------------------------------
def _spectral_normalize(w):
    """spectral_norm semantics: divide the weight by its largest singular value."""
    w2d = np.asarray(w, dtype=np.float64).reshape(w.shape[0], -1)
    sigma = np.linalg.svd(w2d, compute_uv=False)[0]
    return (w / jnp.asarray(sigma, dtype=w.dtype)).astype(w.dtype)


def init_cbam_params(key, channels, reduction=16, dtype=jnp.float32):
    hidden = max(1, channels // reduction)
    ks = jax.random.split(key, 5)

    def rnd(k, shape):
        return (0.1 * jax.random.normal(k, shape, dtype=jnp.float32)).astype(dtype)

    return {
        "w1_avg": _spectral_normalize(rnd(ks[0], (hidden, channels))),
        "w2_avg": _spectral_normalize(rnd(ks[1], (channels, hidden))),
        # fc_max weights exist in the original module but its output is unused
        # (the gate is sigmoid(y_avg + y_avg)); kept only for parameter parity.
        "w1_max": _spectral_normalize(rnd(ks[2], (hidden, channels))),
        "w2_max": _spectral_normalize(rnd(ks[3], (channels, hidden))),
        "w_spatial": _spectral_normalize(rnd(ks[4], (1, 2, 7, 7))),
        "bn_gamma": jnp.ones((1,), dtype),
        "bn_beta": jnp.zeros((1,), dtype),
        "bn_eps": 1e-5,
    }


def channel_gate_vector(x, p):
    """The (N, C) channel gate.  The original module also runs a max-pool MLP
    branch but discards it (gate = sigmoid(y_avg + y_avg)); that dead compute
    is dropped here while keeping identical forward semantics."""
    y_avg = jnp.mean(x, axis=(2, 3))                                  # (N, C)
    y_avg = jax.nn.relu(y_avg @ p["w1_avg"].T) @ p["w2_avg"].T        # (N, C)
    return jax.nn.sigmoid(y_avg + y_avg)


def spatial_gate_from_pool(xg, comp, p):
    """SpatialGate tail: 7x7 conv -> BatchNorm (batch stats) -> sigmoid -> scale."""
    conv = lax.conv_general_dilated(
        comp, p["w_spatial"],
        window_strides=(1, 1),
        padding=((3, 3), (3, 3)),
        dimension_numbers=("NCHW", "OIHW", "NCHW"),
        precision=lax.Precision.HIGHEST,
    )
    # BatchNorm2d on a fresh module (training mode): normalize with batch stats.
    mean = jnp.mean(conv, axis=(0, 2, 3), keepdims=True)
    var = jnp.var(conv, axis=(0, 2, 3), keepdims=True)
    bn = (conv - mean) * lax.rsqrt(var + p["bn_eps"])
    bn = bn * p["bn_gamma"][None, :, None, None] + p["bn_beta"][None, :, None, None]
    # TODO(synk): optionally fuse this final x * sigmoid(bn) pass into a
    # lane-dense Pallas elementwise kernel; currently left to XLA fusion.
    return xg * jax.nn.sigmoid(bn)


def cbam_forward(x, params):
    gate = channel_gate_vector(x, params)                 # (N, C)
    xg, pooled = fused_channel_gate_pool(x, gate)         # Pallas: gate-mul + channel pool
    return spatial_gate_from_pool(xg, pooled, params)


def cbam_forward_ref(x, params):
    """Pure-JAX reference pipeline (no Pallas)."""
    gate = channel_gate_vector(x, params)
    xg = x * gate[:, :, None, None]
    pooled = jnp.concatenate(
        [jnp.max(xg, axis=1, keepdims=True), jnp.mean(xg, axis=1, keepdims=True)],
        axis=1)
    return spatial_gate_from_pool(xg, pooled, params)


if __name__ == "__main__":
    key = jax.random.PRNGKey(0)
    N, C, H, W = 2, 32, 16, 16          # reduction=16 -> hidden=2
    k_x, k_p = jax.random.split(key)
    x = jax.random.normal(k_x, (N, C, H, W), dtype=jnp.float32)
    params = init_cbam_params(k_p, C, reduction=16)

    # 1) Check the fused Pallas kernel against a pure-JAX reference.
    gate = channel_gate_vector(x, params)
    xg, pooled = jax.block_until_ready(jax.jit(fused_channel_gate_pool)(x, gate))
    xg_ref = x * gate[:, :, None, None]
    pooled_ref = jnp.concatenate(
        [jnp.max(xg_ref, axis=1, keepdims=True),
         jnp.mean(xg_ref, axis=1, keepdims=True)], axis=1)
    assert xg.shape == x.shape, xg.shape
    assert pooled.shape == (N, 2, H, W), pooled.shape
    assert jnp.allclose(xg, xg_ref, atol=1e-5, rtol=1e-5), "gated-x mismatch"
    assert jnp.allclose(pooled, pooled_ref, atol=1e-5, rtol=1e-5), "ChannelPool mismatch"

    # 2) Full CBAM forward using the fused Pallas path vs. a pure-JAX pipeline.
    out = jax.block_until_ready(jax.jit(cbam_forward)(x, params))
    out_ref = jax.block_until_ready(jax.jit(cbam_forward_ref)(x, params))
    assert out.shape == x.shape, out.shape
    assert bool(jnp.all(jnp.isfinite(out))), "non-finite CBAM output"
    assert jnp.allclose(out, out_ref, atol=1e-4, rtol=1e-4), "CBAM forward mismatch"

    print("KERNEL_OK")
</pallas_src>

<mosaic_0001>
module attributes {stable_mosaic.version = 11 : i64} {
  func.func @_gated_channel_pool_kernel(%arg0: i32, %arg1: i32, %arg2: memref<1x32x1xf32, #tpu.memory_space<vmem>>, %arg3: memref<1x32x256xf32, #tpu.memory_space<vmem>>, %arg4: memref<1x32x256xf32, #tpu.memory_space<vmem>>, %arg5: memref<1x2x256xf32, #tpu.memory_space<vmem>>) attributes {dimension_semantics = [#tpu.dimension_semantics<parallel>, #tpu.dimension_semantics<parallel>], iteration_bounds = array<i64: 2, 1>, scalar_prefetch = 0 : i64, scratch_operands = 0 : i64, tpu.core_type = #tpu.core_type<tc>, window_params = [{transform_indices = @transform_0, window_bounds = array<i64: 1, 32, 1>}, {transform_indices = @transform_1, window_bounds = array<i64: 1, 32, 256>}, {transform_indices = @transform_2, window_bounds = array<i64: 1, 32, 256>}, {transform_indices = @transform_3, window_bounds = array<i64: 1, 2, 256>}]} {
    %c0 = arith.constant 0 : index
    %c0_0 = arith.constant 0 : index
    %c0_1 = arith.constant 0 : index
    %0 = vector.load %arg3[%c0, %c0_0, %c0_1] : memref<1x32x256xf32, #tpu.memory_space<vmem>>, vector<1x32x256xf32>
    %c0_2 = arith.constant 0 : index
    %c0_3 = arith.constant 0 : index
    %c0_4 = arith.constant 0 : index
    %1 = vector.load %arg2[%c0_2, %c0_3, %c0_4] : memref<1x32x1xf32, #tpu.memory_space<vmem>>, vector<1x32x1xf32>
    %2 = vector.broadcast %1 : vector<1x32x1xf32> to vector<1x32x256xf32>
    %3 = arith.mulf %0, %2 : vector<1x32x256xf32>
    %c0_5 = arith.constant 0 : index
    %c0_6 = arith.constant 0 : index
    %c0_7 = arith.constant 0 : index
    %4 = vector.load %arg4[%c0_5, %c0_6, %c0_7] : memref<1x32x256xf32, #tpu.memory_space<vmem>>, vector<1x32x256xf32>
    tpu.vector_store %arg4[%c0_5, %c0_6, %c0_7], %3 {strides = array<i32>} : memref<1x32x256xf32, #tpu.memory_space<vmem>>, vector<1x32x256xf32>,
    %cst = arith.constant dense<0xFF800000> : vector<1x256xf32>
    %5 = vector.multi_reduction <maximumf>, %3, %cst [1] : vector<1x32x256xf32> to vector<1x256xf32>
    %6 = vector.shape_cast %5 : vector<1x256xf32> to vector<1x1x256xf32>
    %cst_8 = arith.constant dense<0.000000e+00> : vector<1x256xf32>
    %7 = vector.multi_reduction <add>, %3, %cst_8 [1] : vector<1x32x256xf32> to vector<1x256xf32>
    %8 = vector.shape_cast %7 : vector<1x256xf32> to vector<1x1x256xf32>
    %cst_9 = arith.constant 3.125000e-02 : f32
    %9 = vector.broadcast %cst_9 : f32 to vector<1x1x256xf32>
    %10 = arith.mulf %8, %9 : vector<1x1x256xf32>
    %c0_10 = arith.constant 0 : index
    %c0_11 = arith.constant 0 : index
    %c0_12 = arith.constant 0 : index
    %11 = vector.load %arg5[%c0_10, %c0_11, %c0_12] : memref<1x2x256xf32, #tpu.memory_space<vmem>>, vector<1x1x256xf32>
    tpu.vector_store %arg5[%c0_10, %c0_11, %c0_12], %6 {strides = array<i32>} : memref<1x2x256xf32, #tpu.memory_space<vmem>>, vector<1x1x256xf32>,
    %c0_13 = arith.constant 0 : index
    %c1 = arith.constant 1 : index
    %c0_14 = arith.constant 0 : index
    %12 = vector.load %arg5[%c0_13, %c1, %c0_14] : memref<1x2x256xf32, #tpu.memory_space<vmem>>, vector<1x1x256xf32>
    tpu.vector_store %arg5[%c0_13, %c1, %c0_14], %10 {strides = array<i32>} : memref<1x2x256xf32, #tpu.memory_space<vmem>>, vector<1x1x256xf32>,
    return
  }
  func.func @transform_0(%arg0: i32, %arg1: i32) -> (i32, i32, i32) {
    %c0_i32 = arith.constant 0 : i32
    %c0_i32_0 = arith.constant 0 : i32
    %c0_i32_1 = arith.constant 0 : i32
    return %arg0, %c0_i32, %c0_i32_0 : i32, i32, i32
  }
  func.func @transform_1(%arg0: i32, %arg1: i32) -> (i32, i32, i32) {
    %c0_i32 = arith.constant 0 : i32
    %c0_i32_0 = arith.constant 0 : i32
    return %arg0, %c0_i32, %arg1 : i32, i32, i32
  }
  func.func @transform_2(%arg0: i32, %arg1: i32) -> (i32, i32, i32) {
    %c0_i32 = arith.constant 0 : i32
    %c0_i32_0 = arith.constant 0 : i32
    return %arg0, %c0_i32, %arg1 : i32, i32, i32
  }
  func.func @transform_3(%arg0: i32, %arg1: i32) -> (i32, i32, i32) {
    %c0_i32 = arith.constant 0 : i32
    %c0_i32_0 = arith.constant 0 : i32
    return %arg0, %c0_i32, %arg1 : i32, i32, i32
  }
}

</mosaic_0001>

<llo_original>
// kernel: fused_channel_gate_pool.1
$region0: #{fused_channel_gate_pool.1}
  #allocation0 [shape = 'u32[]', space=smem, size = 0x4, offset = 0x4, fixed_abs, tag = 'smem constant byte address 0x4 - core index']
  #allocation1 [shape = 'u32[72,128]{1,0:T(1,128)}', space=vmem, size = 0x9000, scoped, tag = 'internal scratch']
  %s0 = inlined_call_operand.vmem [shape: f32[2,32,1], index: 0, kind: input, shape index: {}]
  %s1 = inlined_call_operand.vmem [shape: f32[2,32,256], index: 1, kind: input, shape index: {}]
  %s2 = inlined_call_operand.vmem [shape: f32[2,32,256], index: 2, kind: output, shape index: {0}]
  %s3 = inlined_call_operand.vmem [shape: f32[2,2,256], index: 3, kind: output, shape index: {1}]
  %4 = xla_tuple %s2, %s3
  %s5 = sld [smem:[#allocation0]]
  $region49: #{fused_channel_gate_pool.1} parent=0
    _
  %s7 = ssub.s32 1, %s5
  %s8 = scalar_select 0, %s7, %s5
  loop: start=0, step=1, limit=4
  $region2: #{fused_channel_gate_pool.1} parent=0 // loop_pre_header
    _
  $region3: #{fused_channel_gate_pool.1} parent=0 // loop_header
    %s10 = sphi 0, %s14
    %p11 = scmp.ge.s32.totalorder %s10, 4
    %s17 = sphi 0, %s29
    %s18 = sphi 0, %s25
    %s19 = sphi 0, %s17
    %s20 = sphi 0, %s18
    %s21 = sphi 0, %s19
    %s22 = sphi 0, %s20
    %s32 = sphi 0, %s34
    %s35 = sphi 0, %s32
    %s36 = sphi 0, %s35
    %s52 = sphi 0, %s36
    %s60 = sphi 0, %s62
    %s63 = sphi 0, %s60
    %s64 = sphi 0, %s63
    %s80 = sphi 0, %s64
    %s88 = sphi 0, %s90
    %s91 = sphi 0, %s88
    %s92 = sphi 0, %s91
    %s108 = sphi 0, %s92
    %s116 = sphi 0, %s118
    %s119 = sphi 0, %s116
    %s120 = sphi 0, %s119
    %s136 = sphi 0, %s120
  $region4: #{fused_channel_gate_pool.1} parent=0 // loop_header_branch
    %13 = sbr.rel (%p11) target = $region8
  $region5: #{fused_channel_gate_pool.1} parent=0 // loop_body
    %s15 = ssub.s32 %s10, 1
    %s16 = ssub.s32 %s10, 2
    %s23 = sadd.s32 1, %s18
    %p24 = scmp.ge.s32.totalorder %s23, 1
    %s25 = scalar_select %p24, 0, %s23
    %s26 = sadd.s32 1, %s17
    %s27 = scalar_select %p24, %s26, %s17
    %p28 = scmp.ge.s32.totalorder %s27, 2
    %s29 = scalar_select %p28, 0, %s27
    %s30 = ssub.s32 %s17, %s29
    %p31 = scmp.eq.s32.totalorder %s30, 0
    %s33 = sadd.s32 %s32, 1
    %s34 = scalar_select %p31, %s32, %s33
    %p37 = pneg %p31
    %p38 = scmp.eq.s32.totalorder %s10, 1
    %p39 = por %p37, %p38
    %p40 = scmp.ne.s32.totalorder %s32, %s35
    %p41 = scmp.eq.s32.totalorder %s10, 0
    %p42 = por %p40, %p41
    %p43 = scmp.ne.s32.totalorder %s32, %s35
    %p44 = scmp.eq.s32.totalorder %s15, 1
    %p45 = por %p43, %p44
    %p46 = scmp.ne.s32.totalorder %s35, %s36
    %p47 = scmp.eq.s32.totalorder %s15, 0
    %p48 = por %p46, %p47
    %p49 = scmp.ne.s32.totalorder %s35, %s36
    %p50 = scmp.eq.s32.totalorder %s16, 1
    %p51 = por %p49, %p50
    %p53 = scmp.ne.s32.totalorder %s36, %s52
    %p54 = scmp.eq.s32.totalorder %s16, 0
    %p55 = por %p53, %p54
    %s56 = ssub.s32 %s17, %s29
    %s57 = ssub.s32 %s18, %s25
    %s58 = sor.u32 %s56, %s57
    %p59 = scmp.eq.s32.totalorder %s58, 0
    %s61 = sadd.s32 %s60, 1
    %s62 = scalar_select %p59, %s60, %s61
    %p65 = pneg %p59
    %p66 = scmp.eq.s32.totalorder %s10, 1
    %p67 = por %p65, %p66
    %p68 = scmp.ne.s32.totalorder %s60, %s63
    %p69 = scmp.eq.s32.totalorder %s10, 0
    %p70 = por %p68, %p69
    %p71 = scmp.ne.s32.totalorder %s60, %s63
    %p72 = scmp.eq.s32.totalorder %s15, 1
    %p73 = por %p71, %p72
    %p74 = scmp.ne.s32.totalorder %s63, %s64
    %p75 = scmp.eq.s32.totalorder %s15, 0
    %p76 = por %p74, %p75
    %p77 = scmp.ne.s32.totalorder %s63, %s64
    %p78 = scmp.eq.s32.totalorder %s16, 1
    %p79 = por %p77, %p78
    %p81 = scmp.ne.s32.totalorder %s64, %s80
    %p82 = scmp.eq.s32.totalorder %s16, 0
    %p83 = por %p81, %p82
    %s84 = ssub.s32 %s17, %s29
    %s85 = ssub.s32 %s18, %s25
    %s86 = sor.u32 %s84, %s85
    %p87 = scmp.eq.s32.totalorder %s86, 0
    %s89 = sadd.s32 %s88, 1
    %s90 = scalar_select %p87, %s88, %s89
    %p93 = pneg %p87
    %p94 = scmp.eq.s32.totalorder %s10, 1
    %p95 = por %p93, %p94
    %p96 = scmp.ne.s32.totalorder %s88, %s91
    %p97 = scmp.eq.s32.totalorder %s10, 0
    %p98 = por %p96, %p97
    %p99 = scmp.ne.s32.totalorder %s88, %s91
    %p100 = scmp.eq.s32.totalorder %s15, 1
    %p101 = por %p99, %p100
    %p102 = scmp.ne.s32.totalorder %s91, %s92
    %p103 = scmp.eq.s32.totalorder %s15, 0
    %p104 = por %p102, %p103
    %p105 = scmp.ne.s32.totalorder %s91, %s92
    %p106 = scmp.eq.s32.totalorder %s16, 1
    %p107 = por %p105, %p106
    %p109 = scmp.ne.s32.totalorder %s92, %s108
    %p110 = scmp.eq.s32.totalorder %s16, 0
    %p111 = por %p109, %p110
    %s112 = ssub.s32 %s17, %s29
    %s113 = ssub.s32 %s18, %s25
    %s114 = sor.u32 %s112, %s113
    %p115 = scmp.eq.s32.totalorder %s114, 0
    %s117 = sadd.s32 %s116, 1
    %s118 = scalar_select %p115, %s116, %s117
    %p121 = pneg %p115
    %p122 = scmp.eq.s32.totalorder %s10, 1
    %p123 = por %p121, %p122
    %p124 = scmp.ne.s32.totalorder %s116, %s119
    %p125 = scmp.eq.s32.totalorder %s10, 0
    %p126 = por %p124, %p125
    %p127 = scmp.ne.s32.totalorder %s116, %s119
    %p128 = scmp.eq.s32.totalorder %s15, 1
    %p129 = por %p127, %p128
    %p130 = scmp.ne.s32.totalorder %s119, %s120
    %p131 = scmp.eq.s32.totalorder %s15, 0
    %p132 = por %p130, %p131
    %p133 = scmp.ne.s32.totalorder %s119, %s120
    %p134 = scmp.eq.s32.totalorder %s16, 1
    %p135 = por %p133, %p134
    %p137 = scmp.ne.s32.totalorder %s120, %s136
    %p138 = scmp.eq.s32.totalorder %s16, 0
    %p139 = por %p137, %p138
    %p140 = scmp.le.s32.totalorder 1, %s10
    %p141 = scmp.lt.s32.totalorder %s10, 3
    %p142 = pnand %p140, %p141
    %p143 = pneg %p142
    // Predicated region
    $region9: #{fused_channel_gate_pool.1} parent=5 // pred_check
      _
    $region10: #{fused_channel_gate_pool.1} parent=5 // pred_check_branch
      %145 = sbr.rel (%p142) target = $region12
    $region11: #{fused_channel_gate_pool.1} parent=5 // pred_region
      %s146 = ssub.s32 %s10, 1
    $region12: #{fused_channel_gate_pool.1} parent=5 // pred_fallthru
      _
    %p147 = scmp.lt.s32.totalorder %s10, 2
    // Predicated region
    $region13: #{fused_channel_gate_pool.1} parent=5 // pred_check
      %p148 = pneg %p147
    $region14: #{fused_channel_gate_pool.1} parent=5 // pred_check_branch
      %150 = sbr.rel (%p148) target = $region16
    $region15: #{fused_channel_gate_pool.1} parent=5 // pred_region
      // Predicated region
      $region17: #{fused_channel_gate_pool.1} parent=15 // pred_check
        %p151 = pneg %p42
      $region18: #{fused_channel_gate_pool.1} parent=15 // pred_check_branch
        %153 = sbr.rel (%p151) target = $region20
      $region19: #{fused_channel_gate_pool.1} parent=15 // pred_region
        %p154 = scmp.lt.s32.totalorder %s17, 1
        %s155 = scalar_select %p154, %s17, 1
        %s156 = smul.addr %s155, 4
        %s157 = smul.addr %s156, 8
        %s158 = scalar_lea.vmem %s0, %s157
      $region20: #{fused_channel_gate_pool.1} parent=15 // pred_fallthru
        _
      // Predicated region
      $region21: #{fused_channel_gate_pool.1} parent=15 // pred_check
        %p159 = pneg %p70
      $region22: #{fused_channel_gate_pool.1} parent=15 // pred_check_branch
        %161 = sbr.rel (%p159) target = $region24
      $region23: #{fused_channel_gate_pool.1} parent=15 // pred_region
        %s162 = smul.u32 2, %s18
        %p163 = scmp.lt.s32.totalorder %s17, 1
        %s164 = scalar_select %p163, %s17, 1
        %p165 = scmp.lt.s32.totalorder %s162, 1
        %s166 = scalar_select %p165, %s162, 1
        %s167 = smul.addr %s164, 8
        %s168 = sadd.s32 %s166, %s167
        %s169 = smul.addr %s168, 8
        %s170 = scalar_lea.vmem %s1, %s169
        %s171 = smul.u32 2, %s18
      $region24: #{fused_channel_gate_pool.1} parent=15 // pred_fallthru
        _
    $region16: #{fused_channel_gate_pool.1} parent=5 // pred_fallthru
      _
    %p172 = scmp.le.s32.totalorder 1, %s10
    %p173 = scmp.lt.s32.totalorder %s10, 3
    %p174 = pnand %p172, %p173
    %p175 = pneg %p174
    // Predicated region
    $region25: #{fused_channel_gate_pool.1} parent=5 // pred_check
      _
    $region26: #{fused_channel_gate_pool.1} parent=5 // pred_check_branch
      %177 = sbr.rel (%p174) target = $region28
    $region27: #{fused_channel_gate_pool.1} parent=5 // pred_region
      %s178 = ssub.s32 %s10, 1
      %p179 = scmp.lt.s32.totalorder %s19, 1
      %s180 = scalar_select %p179, %s19, 1
      %s181 = smul.addr %s180, 4
      %s182 = smul.addr %s181, 8
      %s183 = scalar_lea.vmem %s0, %s182
      %p184 = pneg %p48
      %p185 = pneg %p45
      %s186 = smul.u32 2, %s20
      %p187 = scmp.lt.s32.totalorder %s19, 1
      %s188 = scalar_select %p187, %s19, 1
      %p189 = scmp.lt.s32.totalorder %s186, 1
      %s190 = scalar_select %p189, %s186, 1
      %s191 = smul.addr %s188, 8
      %s192 = sadd.s32 %s190, %s191
      %s193 = smul.addr %s192, 8
      %s194 = scalar_lea.vmem %s1, %s193
      %p195 = pneg %p76
      %p196 = pneg %p73
      %p197 = pneg %p104
      %p198 = pneg %p101
      %s199 = smul.u32 2, %s20
      %p200 = scmp.lt.s32.totalorder %s19, 1
      %s201 = scalar_select %p200, %s19, 1
      %p202 = scmp.lt.s32.totalorder %s199, 1
      %s203 = scalar_select %p202, %s199, 1
      %s204 = smul.addr %s201, 8
      %s205 = sadd.s32 %s203, %s204
      %s206 = smul.addr %s205, 8
      %s207 = scalar_lea.vmem %s2, %s206
      %p208 = pneg %p132
      %p209 = pneg %p129
      %s210 = smul.u32 2, %s20
      %p211 = scmp.lt.s32.totalorder %s19, 1
      %s212 = scalar_select %p211, %s19, 1
      %p213 = scmp.lt.s32.totalorder %s210, 1
      %s214 = scalar_select %p213, %s210, 1
      %s215 = smul.addr %s212, 2
      %s216 = sadd.s32 %s214, %s215
      %s217 = smul.addr %s216, 2
      %s218 = scalar_lea.vmem %s3, %s217
      %p219 = scmp.lt.s32.totalorder %s19, 1
      %s220 = scalar_select %p219, %s19, 1
      %s221 = smul.addr %s220, 4
      %s222 = smul.addr %s221, 8
      %s223 = scalar_lea.vmem %s0, %s222
      %s224 = smul.u32 2, %s20
      %p225 = scmp.lt.s32.totalorder %s19, 1
      %s226 = scalar_select %p225, %s19, 1
      %p227 = scmp.lt.s32.totalorder %s224, 1
      %s228 = scalar_select %p227, %s224, 1
      %s229 = smul.addr %s226, 8
      %s230 = sadd.s32 %s228, %s229
      %s231 = smul.addr %s230, 8
      %s232 = scalar_lea.vmem %s1, %s231
      %s233 = smul.u32 2, %s20
      %s234 = smul.u32 2, %s20
      %p235 = scmp.lt.s32.totalorder %s19, 1
      %s236 = scalar_select %p235, %s19, 1
      %p237 = scmp.lt.s32.totalorder %s234, 1
      %s238 = scalar_select %p237, %s234, 1
      %s239 = smul.addr %s236, 8
      %s240 = sadd.s32 %s238, %s239
      %s241 = smul.addr %s240, 8
      %s242 = scalar_lea.vmem %s2, %s241
      %s243 = smul.u32 2, %s20
      %s244 = smul.u32 2, %s20
      %p245 = scmp.lt.s32.totalorder %s19, 1
      %s246 = scalar_select %p245, %s19, 1
      %p247 = scmp.lt.s32.totalorder %s244, 1
      %s248 = scalar_select %p247, %s244, 1
      %s249 = smul.addr %s246, 2
      %s250 = sadd.s32 %s248, %s249
      %s251 = smul.addr %s250, 2
      %s252 = scalar_lea.vmem %s3, %s251
      %s253 = smul.u32 2, %s20
      %v254 = vld [vmem:[%s232] sm:$0xff]
      %v255 = vld [vmem:[%s232 + $0x8] sm:$0xff]
      %v256 = vld [vmem:[%s232 + $0x10] sm:$0xff]
      %v257 = vld [vmem:[%s232 + $0x18] sm:$0xff]
      %v258 = vld [vmem:[%s232 + $0x20] sm:$0xff]
      %v259 = vld [vmem:[%s232 + $0x28] sm:$0xff]
      %v260 = vld [vmem:[%s232 + $0x30] sm:$0xff]
      %v261 = vld [vmem:[%s232 + $0x38] sm:$0xff]
      %v262 = vld [vmem:[%s223] sm:$0xff]
      %v263 = vld [vmem:[%s223 + $0x8] sm:$0xff]
      %v264 = vld [vmem:[%s223 + $0x10] sm:$0xff]
      %v265 = vld [vmem:[%s223 + $0x18] sm:$0xff]
      %267 = vset.pattern.permute.xlu0 0
      %268 = vperm.xlu0 %267, %v262
      %v269 = vpop.permute.xlu0 %268
      %272 = vset.pattern.permute.xlu0 0
      %273 = vperm.xlu0 %272, %v263
      %v274 = vpop.permute.xlu0 %273
      %277 = vset.pattern.permute.xlu0 0
      %278 = vperm.xlu0 %277, %v264
      %v279 = vpop.permute.xlu0 %278
      %282 = vset.pattern.permute.xlu0 0
      %283 = vperm.xlu0 %282, %v265
      %v284 = vpop.permute.xlu0 %283
      %v286 = vmul.f32 %v254, %v269
      %v287 = vmul.f32 %v255, %v269
      %v288 = vmul.f32 %v256, %v274
      %v289 = vmul.f32 %v257, %v274
      %v290 = vmul.f32 %v258, %v279
      %v291 = vmul.f32 %v259, %v279
      %v292 = vmul.f32 %v260, %v284
      %v293 = vmul.f32 %v261, %v284
      %294 = vst [vmem:[%s242] sm:$0xff] %v286
      %295 = vst [vmem:[%s242 + $0x8] sm:$0xff] %v287
      %296 = vst [vmem:[%s242 + $0x10] sm:$0xff] %v288
      %297 = vst [vmem:[%s242 + $0x18] sm:$0xff] %v289
      %298 = vst [vmem:[%s242 + $0x20] sm:$0xff] %v290
      %299 = vst [vmem:[%s242 + $0x28] sm:$0xff] %v291
      %300 = vst [vmem:[%s242 + $0x30] sm:$0xff] %v292
      %301 = vst [vmem:[%s242 + $0x38] sm:$0xff] %v293
      %v302 = vmax.f32 %v286, %v290
      %v303 = vmax.f32 %v288, %v292
      %v304 = vmax.f32 %v302, %v303
      %v305 = vrot.slane %v304, 4
      %v306 = vmax.f32 %v304, %v305
      %v307 = vrot.slane %v306, 2
      %v308 = vmax.f32 %v306, %v307
      %v309 = vrot.slane %v308, 1
      %v310 = vmax.f32 %v308, %v309
      %v311 = vmax.f32 %v287, %v291
      %v312 = vmax.f32 %v289, %v293
      %v313 = vmax.f32 %v311, %v312
      %v314 = vrot.slane %v313, 4
      %v315 = vmax.f32 %v313, %v314
      %v316 = vrot.slane %v315, 2
      %v317 = vmax.f32 %v315, %v316
      %v318 = vrot.slane %v317, 1
      %v319 = vmax.f32 %v317, %v318
      %v320 = vadd.f32 %v286, %v288
      %v321 = vadd.f32 %v320, %v290
      %v322 = vadd.f32 %v321, %v292
      %v323 = vrot.slane %v322, 4
      %v324 = vadd.f32 %v322, %v323
      %v325 = vrot.slane %v324, 2
      %v326 = vadd.f32 %v324, %v325
      %v327 = vrot.slane %v326, 1
      %v328 = vadd.f32 %v326, %v327
      %v329 = vadd.f32 %v287, %v289
      %v330 = vadd.f32 %v329, %v291
      %v331 = vadd.f32 %v330, %v293
      %v332 = vrot.slane %v331, 4
      %v333 = vadd.f32 %v331, %v332
      %v334 = vrot.slane %v333, 2
      %v335 = vadd.f32 %v333, %v334
      %v336 = vrot.slane %v335, 1
      %v337 = vadd.f32 %v335, %v336
      %v338 = vmul.f32 %v328, 0.03125
      %v339 = vmul.f32 %v337, 0.03125
      %v342 = vrot.slane %v319, 7
      %vm343 = vcmask 1040384
      %v344 = vsel %vm343, %v310, %v342
      %v346 = vlaneseq
      %vm347 = vcmp.ge.s32.totalorder %v346, 0
      %vm348 = vcmp.lt.s32.totalorder %v346, 256
      %vm349 = vmand %vm347, %vm348
      %350 = vst.msk [vmem:[%s252] ss:$2 sm:$0x3] %vm349, %v344
      %v353 = vrot.slane %v339, 7
      %v354 = vsel %vm343, %v338, %v353
      %s356 = scalar_lea.vmem %s252, 1
      %357 = vst.msk [vmem:[%s356] ss:$2 sm:$0x3] %vm349, %v354
      %s358 = smul.u32 2, %s20
      %p359 = scmp.lt.s32.totalorder %s19, 1
      %s360 = scalar_select %p359, %s19, 1
      %p361 = scmp.lt.s32.totalorder %s358, 1
      %s362 = scalar_select %p361, %s358, 1
      %s363 = smul.addr %s360, 8
      %s364 = sadd.s32 %s362, %s363
      %s365 = smul.addr %s364, 8
      %s366 = scalar_lea.vmem %s2, %s365
      %s367 = smul.u32 2, %s20
      %p368 = scmp.lt.s32.totalorder %s19, 1
      %s369 = scalar_select %p368, %s19, 1
      %p370 = scmp.lt.s32.totalorder %s367, 1
      %s371 = scalar_select %p370, %s367, 1
      %s372 = smul.addr %s369, 2
      %s373 = sadd.s32 %s371, %s372
      %s374 = smul.addr %s373, 2
      %s375 = scalar_lea.vmem %s3, %s374
      // Predicated region
      $region29: #{fused_channel_gate_pool.1} parent=27 // pred_check
        %p376 = pneg %p101
      $region30: #{fused_channel_gate_pool.1} parent=27 // pred_check_branch
        %378 = sbr.rel (%p376) target = $region32
      $region31: #{fused_channel_gate_pool.1} parent=27 // pred_region
        %s379 = smul.u32 2, %s20
      $region32: #{fused_channel_gate_pool.1} parent=27 // pred_fallthru
        _
      // Predicated region
      $region33: #{fused_channel_gate_pool.1} parent=27 // pred_check
        %p380 = pneg %p129
      $region34: #{fused_channel_gate_pool.1} parent=27 // pred_check_branch
        %382 = sbr.rel (%p380) target = $region36
      $region35: #{fused_channel_gate_pool.1} parent=27 // pred_region
        %s383 = smul.u32 2, %s20
      $region36: #{fused_channel_gate_pool.1} parent=27 // pred_fallthru
        _
    $region28: #{fused_channel_gate_pool.1} parent=5 // pred_fallthru
      _
    %p384 = scmp.le.s32.totalorder 2, %s10
    // Predicated region
    $region37: #{fused_channel_gate_pool.1} parent=5 // pred_check
      %p385 = pneg %p384
    $region38: #{fused_channel_gate_pool.1} parent=5 // pred_check_branch
      %387 = sbr.rel (%p385) target = $region40
    $region39: #{fused_channel_gate_pool.1} parent=5 // pred_region
      %s388 = ssub.s32 %s10, 2
      // Predicated region
      $region41: #{fused_channel_gate_pool.1} parent=39 // pred_check
        %p389 = pneg %p107
      $region42: #{fused_channel_gate_pool.1} parent=39 // pred_check_branch
        %391 = sbr.rel (%p389) target = $region44
      $region43: #{fused_channel_gate_pool.1} parent=39 // pred_region
        %s392 = smul.u32 2, %s22
        %p393 = scmp.lt.s32.totalorder %s21, 1
        %s394 = scalar_select %p393, %s21, 1
        %p395 = scmp.lt.s32.totalorder %s392, 1
        %s396 = scalar_select %p395, %s392, 1
        %s397 = smul.addr %s394, 8
        %s398 = sadd.s32 %s396, %s397
        %s399 = smul.addr %s398, 8
        %s400 = scalar_lea.vmem %s2, %s399
      $region44: #{fused_channel_gate_pool.1} parent=39 // pred_fallthru
        _
      // Predicated region
      $region45: #{fused_channel_gate_pool.1} parent=39 // pred_check
        %p401 = pneg %p135
      $region46: #{fused_channel_gate_pool.1} parent=39 // pred_check_branch
        %403 = sbr.rel (%p401) target = $region48
      $region47: #{fused_channel_gate_pool.1} parent=39 // pred_region
        %s404 = smul.u32 2, %s22
        %p405 = scmp.lt.s32.totalorder %s21, 1
        %s406 = scalar_select %p405, %s21, 1
        %p407 = scmp.lt.s32.totalorder %s404, 1
        %s408 = scalar_select %p407, %s404, 1
        %s409 = smul.addr %s406, 2
        %s410 = sadd.s32 %s408, %s409
        %s411 = smul.addr %s410, 2
        %s412 = scalar_lea.vmem %s3, %s411
      $region48: #{fused_channel_gate_pool.1} parent=39 // pred_fallthru
        _
    $region40: #{fused_channel_gate_pool.1} parent=5 // pred_fallthru
      _
  $region6: #{fused_channel_gate_pool.1} parent=0 // loop_footer
    %s14 = sadd.s32 1, %s10
  $region7: #{fused_channel_gate_pool.1} parent=0 // loop_footer_branch
    %9 = sbr.rel target = $region3
  $region8: #{fused_channel_gate_pool.1} parent=0 // loop_exit
    _

</llo_original>
